<compile_context>
chip_gen: v7x
topology: tpu7x:2x2x1
jax: 0.10.0
libtpu: 0.0.40
codegen_flags: <defaults>
</compile_context>

<pallas_src>
import jax
import jax.numpy as jnp
from jax.experimental import pallas as pl
from jax.experimental.pallas import tpu as pltpu


def _top1max_tile_kernel(logit_ref, out_ref):
    """One row-tile of the TOP1Max loss.

    logit_ref: (TM, B) block of the (B, B) logit matrix (rows tiled, cols full).
    out_ref:   (1, 128) per-tile partial sum of per-row losses (scalar
               broadcast across lanes; wrapper reads lane 0).
    """
    x = logit_ref[...].astype(jnp.float32)                 # (TM, B) f32
    tm, b = x.shape

    tile_off = pl.program_id(0) * tm
    row_ids = tile_off + jax.lax.broadcasted_iota(jnp.int32, (tm, 1), 0)  # (TM, 1)
    col_ids = jax.lax.broadcasted_iota(jnp.int32, (tm, b), 1)             # (TM, B)
    diag_mask = col_ids == row_ids                                        # (TM, B)

    # diag(logit) for the rows of this tile, as a (TM, 1) column (masked sum).
    diag_vals = jnp.sum(jnp.where(diag_mask, x, 0.0), axis=1, keepdims=True)

    # logit with its diagonal zeroed; row-max of the zeroed matrix for stable exp.
    logit_in = jnp.where(diag_mask, 0.0, x)
    logit_max = jnp.max(logit_in, axis=1, keepdims=True)

    # e_x with the diagonal removed (un-normalized softmax over the negatives).
    e_x = jnp.where(diag_mask, 0.0, jnp.exp(logit_in - logit_max))

    # Per-element term; softmax normalization folded into num/den row sums,
    # so no full (TM, B) normalized-scores temporary is materialized.
    term = jax.nn.sigmoid(x - diag_vals) + jax.nn.sigmoid(x * x)
    row_num = jnp.sum(e_x * term, axis=1, keepdims=True)   # (TM, 1)
    row_den = jnp.sum(e_x, axis=1, keepdims=True)          # (TM, 1)
    row_loss = row_num * pl.reciprocal(row_den, approx=True)

    # Mask padded rows of the last tile (when B is not a multiple of TM).
    valid = row_ids < b
    row_loss = jnp.where(valid, row_loss, 0.0)

    partial = jnp.sum(row_loss, axis=0, keepdims=True)     # (1, 1)
    out_ref[...] = jnp.broadcast_to(partial, (1, 128))


def _pick_tile_rows(b):
    """Largest row-tile that keeps the f32 working set comfortably in VMEM
    (double-buffered (TM, B) input + a few (TM, B) f32 temporaries) across
    v5e/v6e/v7x default scoped-VMEM limits."""
    if b <= 512:
        return b                       # single full-height block
    tm = max(8, min(512, (4 * 1024 * 1024) // (b * 4)))
    return (tm // 8) * 8               # keep sublane-aligned


def top1max_loss(logit):
    """TOP1Max loss for a (B, B) logit matrix. Returns scalar float32."""
    b = logit.shape[0]
    assert logit.shape == (b, b), "TOP1Max expects a square (B, B) logit matrix"
    tm = _pick_tile_rows(b)
    num_tiles = pl.cdiv(b, tm)

    partials = pl.pallas_call(
        _top1max_tile_kernel,
        out_shape=jax.ShapeDtypeStruct((num_tiles, 128), jnp.float32),
        grid=(num_tiles,),
        in_specs=[pl.BlockSpec((tm, b), lambda i: (i, 0))],
        out_specs=pl.BlockSpec((1, 128), lambda i: (i, 0)),
        compiler_params=pltpu.CompilerParams(
            dimension_semantics=("parallel",)),
    )(logit)                            # native dtype; cast happens in-kernel

    # Tiny final reduction + mean (multiply by 1/B, true B) in the wrapper.
    return jnp.sum(partials[:, 0]) * (1.0 / b)


def apr_loss(yhat, adv_yhat, lambda_reg=0.001):
    """APRLoss.forward with the default loss='TOP1Max'."""
    return top1max_loss(yhat) + lambda_reg * top1max_loss(adv_yhat)


# ----------------------------- pure-JAX reference -----------------------------

def _top1max_loss_ref(logit):
    x = logit.astype(jnp.float32)
    b = x.shape[0]
    eye = jnp.eye(b, dtype=jnp.bool_)
    logit_in = jnp.where(eye, 0.0, x)
    logit_max = jnp.max(logit_in, axis=1, keepdims=True)
    e_x = jnp.exp(logit_in - logit_max)
    e_x = jnp.where(eye, 0.0, e_x)
    softmax_scores = e_x / jnp.sum(e_x, axis=1, keepdims=True)
    diag = jnp.diagonal(x)[:, None]
    diff = x - diag
    term = jax.nn.sigmoid(diff) + jax.nn.sigmoid(x * x)
    return jnp.mean(jnp.sum(softmax_scores * term, axis=1))


def _apr_loss_ref(yhat, adv_yhat, lambda_reg=0.001):
    return _top1max_loss_ref(yhat) + lambda_reg * _top1max_loss_ref(adv_yhat)


if __name__ == "__main__":
    key = jax.random.PRNGKey(0)
    k1, k2 = jax.random.split(key)
    B = 8
    yhat = jax.random.normal(k1, (B, B), dtype=jnp.float32)
    adv_yhat = jax.random.normal(k2, (B, B), dtype=jnp.float32)

    loss = jax.block_until_ready(apr_loss(yhat, adv_yhat))
    loss_ref = jax.block_until_ready(_apr_loss_ref(yhat, adv_yhat))

    assert jnp.allclose(loss, loss_ref, atol=1e-3, rtol=1e-3), (loss, loss_ref)
    print("KERNEL_OK")
</pallas_src>

<mosaic_0001>
module attributes {stable_mosaic.version = 11 : i64} {
  func.func @_top1max_tile_kernel(%arg0: i32, %arg1: memref<8x8xf32, #tpu.memory_space<vmem>>, %arg2: memref<1x128xf32, #tpu.memory_space<vmem>>) attributes {dimension_semantics = [#tpu.dimension_semantics<parallel>], iteration_bounds = array<i64: 1>, scalar_prefetch = 0 : i64, scratch_operands = 0 : i64, tpu.core_type = #tpu.core_type<tc>, window_params = [{transform_indices = @transform_0, window_bounds = array<i64: 8, 8>}, {transform_indices = @transform_1, window_bounds = array<i64: 1, 128>}]} {
    %c0 = arith.constant 0 : index
    %c0_0 = arith.constant 0 : index
    %0 = vector.load %arg1[%c0, %c0_0] : memref<8x8xf32, #tpu.memory_space<vmem>>, vector<8x8xf32>
    %c8_i32 = arith.constant 8 : i32
    %1 = arith.muli %arg0, %c8_i32 : i32
    %2 = tpu.iota {dimensions = array<i32: 0>} : vector<8x1xi32>
    %3 = vector.broadcast %1 : i32 to vector<8x1xi32>
    %4 = arith.addi %3, %2 : vector<8x1xi32>
    %5 = tpu.iota {dimensions = array<i32: 1>} : vector<8x8xi32>
    %6 = vector.broadcast %4 : vector<8x1xi32> to vector<8x8xi32>
    %7 = arith.cmpi eq, %5, %6 : vector<8x8xi32>
    %cst = arith.constant 0.000000e+00 : f32
    %8 = vector.broadcast %cst : f32 to vector<8x8xf32>
    %9 = arith.select %7, %0, %8 : vector<8x8xi1>, vector<8x8xf32>
    %cst_1 = arith.constant dense<0.000000e+00> : vector<8xf32>
    %10 = vector.multi_reduction <add>, %9, %cst_1 [1] : vector<8x8xf32> to vector<8xf32>
    %11 = vector.shape_cast %10 : vector<8xf32> to vector<8x1xf32>
    %cst_2 = arith.constant 0.000000e+00 : f32
    %12 = vector.broadcast %cst_2 : f32 to vector<8x8xf32>
    %13 = arith.select %7, %12, %0 : vector<8x8xi1>, vector<8x8xf32>
    %cst_3 = arith.constant dense<0xFF800000> : vector<8xf32>
    %14 = vector.multi_reduction <maximumf>, %13, %cst_3 [1] : vector<8x8xf32> to vector<8xf32>
    %15 = vector.shape_cast %14 : vector<8xf32> to vector<8x1xf32>
    %16 = vector.broadcast %15 : vector<8x1xf32> to vector<8x8xf32>
    %17 = arith.subf %13, %16 : vector<8x8xf32>
    %18 = math.exp %17 : vector<8x8xf32>
    %cst_4 = arith.constant 0.000000e+00 : f32
    %19 = vector.broadcast %cst_4 : f32 to vector<8x8xf32>
    %20 = arith.select %7, %19, %18 : vector<8x8xi1>, vector<8x8xf32>
    %21 = vector.broadcast %11 : vector<8x1xf32> to vector<8x8xf32>
    %22 = arith.subf %0, %21 : vector<8x8xf32>
    %23 = arith.negf %22 : vector<8x8xf32>
    %24 = math.exp %23 : vector<8x8xf32>
    %cst_5 = arith.constant 1.000000e+00 : f32
    %25 = vector.broadcast %cst_5 : f32 to vector<8x8xf32>
    %26 = arith.addf %25, %24 : vector<8x8xf32>
    %27 = arith.divf %25, %26 : vector<8x8xf32>
    %28 = arith.mulf %0, %0 : vector<8x8xf32>
    %29 = arith.negf %28 : vector<8x8xf32>
    %30 = math.exp %29 : vector<8x8xf32>
    %cst_6 = arith.constant 1.000000e+00 : f32
    %31 = vector.broadcast %cst_6 : f32 to vector<8x8xf32>
    %32 = arith.addf %31, %30 : vector<8x8xf32>
    %33 = arith.divf %31, %32 : vector<8x8xf32>
    %34 = arith.addf %27, %33 : vector<8x8xf32>
    %35 = arith.mulf %20, %34 : vector<8x8xf32>
    %cst_7 = arith.constant dense<0.000000e+00> : vector<8xf32>
    %36 = vector.multi_reduction <add>, %35, %cst_7 [1] : vector<8x8xf32> to vector<8xf32>
    %37 = vector.shape_cast %36 : vector<8xf32> to vector<8x1xf32>
    %cst_8 = arith.constant dense<0.000000e+00> : vector<8xf32>
    %38 = vector.multi_reduction <add>, %20, %cst_8 [1] : vector<8x8xf32> to vector<8xf32>
    %39 = vector.shape_cast %38 : vector<8xf32> to vector<8x1xf32>
    %40 = tpu.reciprocal %39 {approx = true} : vector<8x1xf32> -> vector<8x1xf32>
    %41 = arith.mulf %37, %40 : vector<8x1xf32>
    %c8_i32_9 = arith.constant 8 : i32
    %42 = vector.broadcast %c8_i32_9 : i32 to vector<8x1xi32>
    %43 = arith.cmpi slt, %4, %42 : vector<8x1xi32>
    %cst_10 = arith.constant 0.000000e+00 : f32
    %44 = vector.broadcast %cst_10 : f32 to vector<8x1xf32>
    %45 = arith.select %43, %41, %44 : vector<8x1xi1>, vector<8x1xf32>
    %cst_11 = arith.constant dense<0.000000e+00> : vector<1xf32>
    %46 = vector.multi_reduction <add>, %45, %cst_11 [0] : vector<8x1xf32> to vector<1xf32>
    %47 = vector.shape_cast %46 : vector<1xf32> to vector<1x1xf32>
    %48 = vector.shape_cast %47 : vector<1x1xf32> to vector<1x1xf32>
    %49 = vector.broadcast %48 : vector<1x1xf32> to vector<1x128xf32>
    %c0_12 = arith.constant 0 : index
    %c0_13 = arith.constant 0 : index
    %50 = vector.load %arg2[%c0_12, %c0_13] : memref<1x128xf32, #tpu.memory_space<vmem>>, vector<1x128xf32>
    tpu.vector_store %arg2[%c0_12, %c0_13], %49 {strides = array<i32>} : memref<1x128xf32, #tpu.memory_space<vmem>>, vector<1x128xf32>,
    return
  }
  func.func @transform_0(%arg0: i32) -> (i32, i32) {
    %c0_i32 = arith.constant 0 : i32
    %c0_i32_0 = arith.constant 0 : i32
    return %arg0, %c0_i32 : i32, i32
  }
  func.func @transform_1(%arg0: i32) -> (i32, i32) {
    %c0_i32 = arith.constant 0 : i32
    %c0_i32_0 = arith.constant 0 : i32
    return %arg0, %c0_i32 : i32, i32
  }
}

</mosaic_0001>

<llo_original>
// kernel: tpu_custom_call.1
$region0: #{tpu_custom_call.1}
  #allocation0 [shape = 'u32[]', space=smem, size = 0x4, offset = 0x4, fixed_abs, tag = 'smem constant byte address 0x4 - core index']
  #allocation1 [shape = 'u32[144,128]{1,0:T(1,128)}', space=vmem, size = 0x12000, scoped, tag = 'internal scratch']
  %s0 = inlined_call_operand.hbm [shape: f32[8,8], index: 0, kind: input, shape index: {}]
  %s1 = inlined_call_operand.hbm [shape: f32[1,128], index: 1, kind: output, shape index: {}]
  %s2 = sld [smem:[#allocation0]]
  $region18: #{tpu_custom_call.1} parent=0
    _
  %s4 = ssub.s32 1, %s2
  %s5 = scalar_select 0, %s4, %s2
  $region1: #{tpu_custom_call.1} parent=0
    #allocation2 [shape = 'u8[4096]{0}', space=vmem, size = 0x1000, scoped, tag = 'input window, operand 0, single buffered']
    #allocation3 [shape = 's32[1]{0}', space=sflag, size = 0x4, scoped, tag = 'scoped memory for tpu_custom_call.1']
    #allocation4 [shape = 's32[1]{0}', space=sflag, size = 0x4, scoped, tag = 'scoped memory for tpu_custom_call.1']
    #allocation5 [shape = 'u8[512]{0}', space=vmem, size = 0x400, scoped, tag = 'output window, operand 0, single buffered']
    %6 = vsyncpa [#allocation3], 0
    %7 = vsyncpa [#allocation4], 0
    // Predicated region
    $region2: #{tpu_custom_call.1} parent=1 // pred_check
      _
    $region3: #{tpu_custom_call.1} parent=1 // pred_check_branch
      %9 = sbr.rel (0) target = $region5
    $region4: #{tpu_custom_call.1} parent=1 // pred_region
      %s11 = ssub.s32 128, 128
      %12 = vsyncadd [#allocation3], %s11
      %s14 = sshll.u32 [#allocation2], 4
      %s15 = int_to_ptr.vmem [resolvable:$true] %s14
      %17 = dma.hbm_to_vmem [thread:$0]  %s0, 128, %s15, [#allocation3]
    $region5: #{tpu_custom_call.1} parent=1 // pred_fallthru
      _
    // Predicated region
    $region6: #{tpu_custom_call.1} parent=1 // pred_check
      _
    $region7: #{tpu_custom_call.1} parent=1 // pred_check_branch
      %19 = sbr.rel (0) target = $region9
    $region8: #{tpu_custom_call.1} parent=1 // pred_region
      %20 = dma.done [#allocation3], 128
    $region9: #{tpu_custom_call.1} parent=1 // pred_fallthru
      _
    %v21 = vld [vmem:[#allocation2] sm:$0xff]
    %s22 = smul.u32 0, 8
    %v23 = vlaneseq
    %v24 = vshrl.u32 %v23, 7
    %v25 = vstv %s22
    %v26 = vadd.s32 %v25, %v24
    %v27 = vlaneseq
    %v28 = vand.u32 %v27, 127
    %vm29 = vcmp.eq.s32.totalorder %v28, %v26
    %v30 = vsel %vm29, %v21, 0.0
    %vm31 = vcmask 64512
    %v32 = vsel %vm31, %v30, 0.0
    %33 = vadd.xlane.f32.xlu0 %v32
    %v34 = vpop.xlane.xlu0 %33
    %v35 = vsel %vm29, 0.0, %v21
    %v36 = vsel %vm31, %v35, -inf
    %37 = vmax.xlane.f32.xlu0 %v36
    %v38 = vpop.xlane.xlu0 %37
    %v39 = vsub.f32 %v35, %v38
    %v40 = vmul.f32 %v39, 1.442695
    %v41 = vpow.pop %v40
    %v42 = vsel %vm29, 0.0, %v41
    %v43 = vsub.f32 %v21, %v34
    %v44 = vxor.u32 %v43, 2147483648
    %v45 = vmul.f32 %v44, 1.442695
    %v46 = vpow.pop %v45
    %v47 = vadd.f32 %v46, 1.0
    %v48 = vrcp.pop %v47
    %v49 = vmul.f32 1.0, %v48
    %v50 = vmul.f32 %v21, %v21
    %v51 = vxor.u32 %v50, 2147483648
    %v52 = vmul.f32 %v51, 1.442695
    %v53 = vpow.pop %v52
    %v54 = vadd.f32 %v53, 1.0
    %v55 = vrcp.pop %v54
    %v56 = vmul.f32 1.0, %v55
    %v57 = vadd.f32 %v49, %v56
    %v58 = vmul.f32 %v42, %v57
    %v59 = vsel %vm31, %v58, 0.0
    %60 = vadd.xlane.f32.xlu0 %v59
    %v61 = vpop.xlane.xlu0 %60
    %v62 = vsel %vm31, %v42, 0.0
    %63 = vadd.xlane.f32.xlu0 %v62
    %v64 = vpop.xlane.xlu0 %63
    %v65 = vrcp.pop %v64
    %v66 = vmul.f32 %v61, %v65
    %vm67 = vcmp.lt.s32.totalorder %v26, 8
    %v68 = vsel %vm67, %v66, 0.0
    %v69 = vrot.slane %v68, 4
    %v70 = vadd.f32 %v68, %v69
    %v71 = vrot.slane %v70, 2
    %v72 = vadd.f32 %v70, %v71
    %v73 = vrot.slane %v72, 1
    %v74 = vadd.f32 %v72, %v73
    %75 = vst [vmem:[#allocation5] sm:$0x1] %v74
    // Predicated region
    $region10: #{tpu_custom_call.1} parent=1 // pred_check
      _
    $region11: #{tpu_custom_call.1} parent=1 // pred_check_branch
      %77 = sbr.rel (0) target = $region13
    $region12: #{tpu_custom_call.1} parent=1 // pred_region
      %s79 = ssub.s32 16, 16
      %80 = vsyncadd [#allocation4], %s79
      %s82 = sshll.u32 [#allocation5], 4
      %s83 = int_to_ptr.vmem [resolvable:$true] %s82
      %85 = dma.vmem_to_hbm [thread:$0]  %s83, 16, %s1, [#allocation4]
    $region13: #{tpu_custom_call.1} parent=1 // pred_fallthru
      _
    // Predicated region
    $region14: #{tpu_custom_call.1} parent=1 // pred_check
      _
    $region15: #{tpu_custom_call.1} parent=1 // pred_check_branch
      %87 = sbr.rel (0) target = $region17
    $region16: #{tpu_custom_call.1} parent=1 // pred_region
      %88 = dma.done [#allocation4], 16
    $region17: #{tpu_custom_call.1} parent=1 // pred_fallthru
      _
    %89 = vsyncpa [#allocation3], 1
    %90 = vsyncpa [#allocation4], 1

</llo_original>
